<compile_context>
chip_gen: v7x
topology: tpu7x:2x2x1
jax: 0.10.0
libtpu: 0.0.40
codegen_flags: <defaults>
</compile_context>

<pallas_src>
import jax
import jax.numpy as jnp
from jax.experimental import pallas as pl
from jax.experimental.pallas import tpu as pltpu

_MIB = 1024 * 1024


def _round_up(x, m):
    return ((x + m - 1) // m) * m


def _pad2(x, rows, cols):
    return jnp.pad(x, ((0, rows - x.shape[0]), (0, cols - x.shape[1])))


def _vmem_limit_bytes():
    """~48 MiB on v7x (64 MiB physical), ~96 MiB on v5e/v6e (128 MiB physical)."""
    cap = 64 * _MIB
    try:
        info_cap = int(pltpu.get_tpu_info().vmem_capacity_bytes)
        if info_cap > 0:
            cap = info_cap
    except Exception:
        pass
    return max(32 * _MIB, min(3 * cap // 4, cap - 8 * _MIB))


def _choose_tiles(n):
    """Return (n_pad, tile). Equal row/contraction tiles, capped at 512; the
    row axis keeps >=2 tiles once the graph is big enough so both v7x
    TensorCores receive work under dimension_semantics=('parallel', ...)."""
    n128 = _round_up(n, 128)
    if n128 >= 1024:
        tile = 512
    elif n128 >= 512:
        tile = 256
    else:
        tile = 128
    return _round_up(n, tile), tile


def _make_agg_kernel(*, tk, x_resident, finalize):
    """out[i] = finalize(sum_k A[i,k] @ X[k]);  grid = (row_tiles, k_tiles)."""

    def kernel(*refs):
        a_ref, x_ref = refs[0], refs[1]
        extra = refs[2:-2]
        o_ref, acc_ref = refs[-2], refs[-1]
        k = pl.program_id(1)

        @pl.when(k == 0)
        def _():
            acc_ref[...] = jnp.zeros_like(acc_ref)

        if x_resident:
            start = pl.multiple_of(k * tk, tk)
            x_blk = x_ref[pl.ds(start, tk), :]
        else:
            x_blk = x_ref[...]

        # Single streaming MXU matmul per step; f32 accumulation in VMEM.
        acc_ref[...] += jnp.dot(a_ref[...], x_blk,
                                preferred_element_type=jnp.float32)

        @pl.when(k == pl.num_programs(1) - 1)
        def _():
            o_ref[...] = finalize(acc_ref[...], extra).astype(o_ref.dtype)

    return kernel


def _gcn_aggregate(a, x, extras, finalize, *, tm, tk, x_resident, out_width,
                   out_dtype, finalize_flops, vmem_limit):
    """a: (Np, Np) bf16, x: (Np, Cx) bf16, extras: resident 2-D params."""
    n_pad = a.shape[0]
    c_x = x.shape[1]
    grid = (n_pad // tm, n_pad // tk)

    if x_resident:
        x_spec = pl.BlockSpec((n_pad, c_x), lambda i, k: (0, 0))
    else:
        x_spec = pl.BlockSpec((tk, c_x), lambda i, k: (k, 0))
    extra_specs = [pl.BlockSpec(e.shape, lambda i, k: (0, 0)) for e in extras]

    flops = 2 * n_pad * n_pad * c_x + finalize_flops
    x_reads = 1 if x_resident else grid[0]
    bytes_accessed = (a.size * a.dtype.itemsize
                      + x.size * x.dtype.itemsize * x_reads
                      + sum(int(e.size) * e.dtype.itemsize for e in extras)
                      + n_pad * out_width * jnp.dtype(out_dtype).itemsize)

    kernel = _make_agg_kernel(tk=tk, x_resident=x_resident, finalize=finalize)

    return pl.pallas_call(
        kernel,
        out_shape=jax.ShapeDtypeStruct((n_pad, out_width), out_dtype),
        grid_spec=pltpu.PrefetchScalarGridSpec(
            num_scalar_prefetch=0,
            grid=grid,
            in_specs=[pl.BlockSpec((tm, tk), lambda i, k: (i, k)),   # A_hat tile
                      x_spec,                                        # X / G
                      *extra_specs],                                 # W / bias
            out_specs=pl.BlockSpec((tm, out_width), lambda i, k: (i, 0)),
            scratch_shapes=[pltpu.VMEM((tm, c_x), jnp.float32)],
        ),
        compiler_params=pltpu.CompilerParams(
            dimension_semantics=("parallel", "arbitrary"),
            vmem_limit_bytes=int(vmem_limit),
        ),
        cost_estimate=pl.CostEstimate(flops=int(flops), transcendentals=0,
                                      bytes_accessed=int(bytes_accessed)),
    )(a, x, *extras)


def gcn_forward(x, edge_index, w1, b1, w2, b2):
    """x: [N, C_in] f32, edge_index: [2, E] int32 (row=source, col=target)."""
    n, c_in = x.shape
    c_hid = w1.shape[1]
    c_out = w2.shape[1]

    # --- dense normalized adjacency (PyG gcn_norm, add_remaining_self_loops) --
    row, col = edge_index[0], edge_index[1]
    a = jnp.zeros((n, n), jnp.float32).at[col, row].add(1.0)
    a = a + jnp.diag(jnp.where(jnp.diagonal(a) == 0.0, 1.0, 0.0))
    deg = a.sum(axis=1)
    dinv = jnp.where(deg > 0, jax.lax.rsqrt(deg), 0.0)
    # Scale + bf16 cast fused into one pass; no extra f32 a_hat copy kept live.
    a_hat = (a * dinv[:, None] * dinv[None, :]).astype(jnp.bfloat16)

    # --- padding / tiling ------------------------------------------------------
    n_pad, tile = _choose_tiles(n)
    ci_p, ch_p, co_p = (_round_up(c, 128) for c in (c_in, c_hid, c_out))
    vmem_limit = _vmem_limit_bytes()

    a_p = _pad2(a_hat, n_pad, n_pad)
    w1_p = _pad2(w1, ci_p, ch_p).astype(jnp.bfloat16)
    w2_p = _pad2(w2, ch_p, co_p).astype(jnp.bfloat16)
    b1_p = jnp.pad(b1, (0, ch_p - c_hid)).reshape(1, -1).astype(jnp.float32)
    b2_p = jnp.pad(b2, (0, co_p - c_out)).reshape(1, -1).astype(jnp.float32)

    # Layer-1 feature stream: aggregate-first if X is at least as narrow as the
    # hidden width; otherwise hoist X@W1 out of the kernel entirely (tiny
    # N*Ci*Ch XLA dot) so the N^2 aggregation always runs at the narrow width
    # and the inner loop never repeats the transform.
    if ci_p <= ch_p:
        x_stream = _pad2(x.astype(jnp.bfloat16), n_pad, ci_p)

        def finalize1(acc, extra):
            w1r, b1r, w2r = extra
            h = jnp.dot(acc.astype(w1r.dtype), w1r[...],
                        preferred_element_type=jnp.float32) + b1r[...]
            h = jnp.maximum(h, 0.0)
            return jnp.dot(h.astype(w2r.dtype), w2r[...],
                           preferred_element_type=jnp.float32)

        extras1 = (w1_p, b1_p, w2_p)
        fin_flops1 = 2 * n_pad * ci_p * ch_p + 2 * n_pad * ch_p * co_p
    else:
        xw1 = jnp.dot(x.astype(jnp.bfloat16), w1.astype(jnp.bfloat16),
                      preferred_element_type=jnp.float32).astype(jnp.bfloat16)
        x_stream = _pad2(xw1, n_pad, ch_p)

        def finalize1(acc, extra):
            b1r, w2r = extra
            h = jnp.maximum(acc + b1r[...], 0.0)
            return jnp.dot(h.astype(w2r.dtype), w2r[...],
                           preferred_element_type=jnp.float32)

        extras1 = (b1_p, w2_p)
        fin_flops1 = 2 * n_pad * ch_p * co_p

    # X / G go fully VMEM-resident (DMA'd once, not re-fetched per row tile)
    # when they fit the budget; double-buffered allocation assumed.
    def _resident(c_width):
        return 2 * n_pad * c_width * 2 <= vmem_limit // 3

    # Layer 1, fused with ReLU and the layer-2 feature transform:
    #   G = relu((A_hat @ X) @ W1 + b1) @ W2
    g = _gcn_aggregate(
        a_p, x_stream, extras1, finalize1, tm=tile, tk=tile,
        x_resident=_resident(x_stream.shape[1]), out_width=co_p,
        out_dtype=jnp.bfloat16, finalize_flops=fin_flops1,
        vmem_limit=vmem_limit)

    # Layer 2 is now a pure aggregation:  out = A_hat @ G + b2
    def finalize2(acc, extra):
        (b2r,) = extra
        return acc + b2r[...]

    out = _gcn_aggregate(
        a_p, g, (b2_p,), finalize2, tm=tile, tk=tile,
        x_resident=_resident(co_p), out_width=co_p,
        out_dtype=jnp.float32, finalize_flops=n_pad * co_p,
        vmem_limit=vmem_limit)

    return out[:n, :c_out]


if __name__ == "__main__":
    # Small deterministic problem: 16 nodes, in=8, hidden=32, out=16, 40 edges.
    N, C_IN, C_HID, C_OUT, E = 16, 8, 32, 16, 40

    key = jax.random.PRNGKey(0)
    kx, ke, k1, k2 = jax.random.split(key, 4)

    x = jax.random.normal(kx, (N, C_IN), dtype=jnp.float32)
    edge_index = jax.random.randint(ke, (2, E), 0, N, dtype=jnp.int32)

    # GCNConv parameters (glorot-ish deterministic init; zero bias like PyG default).
    s1 = (6.0 / (C_IN + C_HID)) ** 0.5
    w1 = jax.random.uniform(k1, (C_IN, C_HID), jnp.float32, -s1, s1)
    b1 = jnp.zeros((C_HID,), jnp.float32)
    s2 = (6.0 / (C_HID + C_OUT)) ** 0.5
    w2 = jax.random.uniform(k2, (C_HID, C_OUT), jnp.float32, -s2, s2)
    b2 = jnp.zeros((C_OUT,), jnp.float32)

    out = gcn_forward(x, edge_index, w1, b1, w2, b2)
    jax.block_until_ready(out)

    # Pure-JAX f32 reference of the same dense gcn_norm formulation.
    a = jnp.zeros((N, N), jnp.float32).at[edge_index[1], edge_index[0]].add(1.0)
    a = a + jnp.diag(jnp.where(jnp.diagonal(a) == 0.0, 1.0, 0.0))
    deg = a.sum(axis=1)
    dinv = jnp.where(deg > 0, jax.lax.rsqrt(deg), 0.0)
    a_hat = a * dinv[:, None] * dinv[None, :]
    ref = a_hat @ jnp.maximum(a_hat @ (x @ w1) + b1, 0.0) @ w2 + b2

    # bf16 MXU operands with f32 accumulation -> loosen tolerance vs f32 ref.
    err = float(jnp.max(jnp.abs(out - ref)))
    assert jnp.allclose(out, ref, atol=3e-2, rtol=3e-2), f"mismatch vs reference: {err}"
    assert out.shape == (N, C_OUT)
    print("KERNEL_OK")
</pallas_src>

<mosaic_0001>
module attributes {stable_mosaic.version = 11 : i64} {
  func.func @kernel(%arg0: i32, %arg1: i32, %arg2: memref<128x128xbf16, #tpu.memory_space<vmem>>, %arg3: memref<128x128xbf16, #tpu.memory_space<vmem>>, %arg4: memref<128x128xbf16, #tpu.memory_space<vmem>>, %arg5: memref<1x128xf32, #tpu.memory_space<vmem>>, %arg6: memref<128x128xbf16, #tpu.memory_space<vmem>>, %arg7: memref<128x128xbf16, #tpu.memory_space<vmem>>, %arg8: memref<128x128xf32, #tpu.memory_space<vmem>>) attributes {dimension_semantics = [#tpu.dimension_semantics<parallel>, #tpu.dimension_semantics<arbitrary>], iteration_bounds = array<i64: 1, 1>, scalar_prefetch = 0 : i64, scratch_operands = 1 : i64, tpu.core_type = #tpu.core_type<tc>, window_params = [{transform_indices = @transform_0, window_bounds = array<i64: 128, 128>}, {pipeline_mode = #tpu.pipeline_mode<synchronous>, transform_indices = @transform_1, window_bounds = array<i64: 128, 128>}, {pipeline_mode = #tpu.pipeline_mode<synchronous>, transform_indices = @transform_2, window_bounds = array<i64: 128, 128>}, {pipeline_mode = #tpu.pipeline_mode<synchronous>, transform_indices = @transform_3, window_bounds = array<i64: 1, 128>}, {pipeline_mode = #tpu.pipeline_mode<synchronous>, transform_indices = @transform_4, window_bounds = array<i64: 128, 128>}, {transform_indices = @transform_5, window_bounds = array<i64: 128, 128>}]} {
    %c0_i32 = arith.constant 0 : i32
    %0 = arith.cmpi eq, %arg1, %c0_i32 : i32
    %1 = arith.extui %0 : i1 to i32
    %c0_i32_0 = arith.constant 0 : i32
    %2 = arith.cmpi ne, %1, %c0_i32_0 : i32
    scf.if %2 {
      %cst_9 = arith.constant 0.000000e+00 : f32
      %15 = vector.broadcast %cst_9 : f32 to vector<128x128xf32>
      %c0_10 = arith.constant 0 : index
      %c0_11 = arith.constant 0 : index
      %16 = vector.load %arg8[%c0_10, %c0_11] : memref<128x128xf32, #tpu.memory_space<vmem>>, vector<128x128xf32>
      tpu.vector_store %arg8[%c0_10, %c0_11], %15 {strides = array<i32>} : memref<128x128xf32, #tpu.memory_space<vmem>>, vector<128x128xf32>,
    } else {
    }
    %c128_i32 = arith.constant 128 : i32
    %3 = arith.muli %arg1, %c128_i32 : i32
    %4 = tpu.assume_multiple %3, 128 : i32
    %5 = arith.index_cast %4 : i32 to index
    %c0 = arith.constant 0 : index
    %6 = vector.load %arg3[%5, %c0] : memref<128x128xbf16, #tpu.memory_space<vmem>>, vector<128x128xbf16>
    %c0_1 = arith.constant 0 : index
    %c0_2 = arith.constant 0 : index
    %7 = vector.load %arg8[%c0_1, %c0_2] : memref<128x128xf32, #tpu.memory_space<vmem>>, vector<128x128xf32>
    %c0_3 = arith.constant 0 : index
    %c0_4 = arith.constant 0 : index
    %8 = vector.load %arg2[%c0_3, %c0_4] : memref<128x128xbf16, #tpu.memory_space<vmem>>, vector<128x128xbf16>
    %cst = arith.constant dense<0.000000e+00> : vector<128x128xf32>
    %9 = tpu.matmul %8, %6, %cst {dimension_numbers = #tpu.dot_dimension_numbers<[1], [0], [0], [1], [0, 0, 1, 1], [], []>} : vector<128x128xbf16>, vector<128x128xbf16>, vector<128x128xf32> -> vector<128x128xf32>
    %10 = arith.addf %7, %9 : vector<128x128xf32>
    %c0_5 = arith.constant 0 : index
    %c0_6 = arith.constant 0 : index
    %11 = vector.load %arg8[%c0_5, %c0_6] : memref<128x128xf32, #tpu.memory_space<vmem>>, vector<128x128xf32>
    tpu.vector_store %arg8[%c0_5, %c0_6], %10 {strides = array<i32>} : memref<128x128xf32, #tpu.memory_space<vmem>>, vector<128x128xf32>,
    %c0_i32_7 = arith.constant 0 : i32
    %12 = arith.cmpi eq, %arg1, %c0_i32_7 : i32
    %13 = arith.extui %12 : i1 to i32
    %c0_i32_8 = arith.constant 0 : i32
    %14 = arith.cmpi ne, %13, %c0_i32_8 : i32
    scf.if %14 {
      %c0_9 = arith.constant 0 : index
      %c0_10 = arith.constant 0 : index
      %15 = vector.load %arg8[%c0_9, %c0_10] : memref<128x128xf32, #tpu.memory_space<vmem>>, vector<128x128xf32>
      %16 = arith.truncf %15 : vector<128x128xf32> to vector<128x128xbf16>
      %c0_11 = arith.constant 0 : index
      %c0_12 = arith.constant 0 : index
      %17 = vector.load %arg4[%c0_11, %c0_12] : memref<128x128xbf16, #tpu.memory_space<vmem>>, vector<128x128xbf16>
      %cst_13 = arith.constant dense<0.000000e+00> : vector<128x128xf32>
      %18 = tpu.matmul %16, %17, %cst_13 {dimension_numbers = #tpu.dot_dimension_numbers<[1], [0], [0], [1], [0, 0, 1, 1], [], []>} : vector<128x128xbf16>, vector<128x128xbf16>, vector<128x128xf32> -> vector<128x128xf32>
      %c0_14 = arith.constant 0 : index
      %c0_15 = arith.constant 0 : index
      %19 = vector.load %arg5[%c0_14, %c0_15] : memref<1x128xf32, #tpu.memory_space<vmem>>, vector<1x128xf32>
      %20 = vector.broadcast %19 : vector<1x128xf32> to vector<128x128xf32>
      %21 = arith.addf %18, %20 : vector<128x128xf32>
      %cst_16 = arith.constant 0.000000e+00 : f32
      %22 = vector.broadcast %cst_16 : f32 to vector<128x128xf32>
      %23 = arith.maximumf %21, %22 : vector<128x128xf32>
      %24 = arith.truncf %23 : vector<128x128xf32> to vector<128x128xbf16>
      %c0_17 = arith.constant 0 : index
      %c0_18 = arith.constant 0 : index
      %25 = vector.load %arg6[%c0_17, %c0_18] : memref<128x128xbf16, #tpu.memory_space<vmem>>, vector<128x128xbf16>
      %cst_19 = arith.constant dense<0.000000e+00> : vector<128x128xf32>
      %26 = tpu.matmul %24, %25, %cst_19 {dimension_numbers = #tpu.dot_dimension_numbers<[1], [0], [0], [1], [0, 0, 1, 1], [], []>} : vector<128x128xbf16>, vector<128x128xbf16>, vector<128x128xf32> -> vector<128x128xf32>
      %27 = arith.truncf %26 : vector<128x128xf32> to vector<128x128xbf16>
      %c0_20 = arith.constant 0 : index
      %c0_21 = arith.constant 0 : index
      %28 = vector.load %arg7[%c0_20, %c0_21] : memref<128x128xbf16, #tpu.memory_space<vmem>>, vector<128x128xbf16>
      tpu.vector_store %arg7[%c0_20, %c0_21], %27 {strides = array<i32>} : memref<128x128xbf16, #tpu.memory_space<vmem>>, vector<128x128xbf16>,
    } else {
    }
    return
  }
  func.func @transform_0(%arg0: i32, %arg1: i32) -> (i32, i32) {
    %c0_i32 = arith.constant 0 : i32
    return %arg0, %arg1 : i32, i32
  }
  func.func @transform_1(%arg0: i32, %arg1: i32) -> (i32, i32) {
    %c0_i32 = arith.constant 0 : i32
    %c0_i32_0 = arith.constant 0 : i32
    %c0_i32_1 = arith.constant 0 : i32
    return %c0_i32, %c0_i32_0 : i32, i32
  }
  func.func @transform_2(%arg0: i32, %arg1: i32) -> (i32, i32) {
    %c0_i32 = arith.constant 0 : i32
    %c0_i32_0 = arith.constant 0 : i32
    %c0_i32_1 = arith.constant 0 : i32
    return %c0_i32, %c0_i32_0 : i32, i32
  }
  func.func @transform_3(%arg0: i32, %arg1: i32) -> (i32, i32) {
    %c0_i32 = arith.constant 0 : i32
    %c0_i32_0 = arith.constant 0 : i32
    %c0_i32_1 = arith.constant 0 : i32
    return %c0_i32, %c0_i32_0 : i32, i32
  }
  func.func @transform_4(%arg0: i32, %arg1: i32) -> (i32, i32) {
    %c0_i32 = arith.constant 0 : i32
    %c0_i32_0 = arith.constant 0 : i32
    %c0_i32_1 = arith.constant 0 : i32
    return %c0_i32, %c0_i32_0 : i32, i32
  }
  func.func @transform_5(%arg0: i32, %arg1: i32) -> (i32, i32) {
    %c0_i32 = arith.constant 0 : i32
    %c0_i32_0 = arith.constant 0 : i32
    return %arg0, %c0_i32 : i32, i32
  }
}

</mosaic_0001>

<llo_original>
// kernel: tpu_custom_call.1
$region0: #{tpu_custom_call.1}
  #allocation0 [shape = 'u32[]', space=smem, size = 0x4, offset = 0x4, fixed_abs, tag = 'smem constant byte address 0x4 - core index']
  #allocation1 [shape = 'u32[144,128]{1,0:T(1,128)}', space=vmem, size = 0x12000, scoped, tag = 'internal scratch']
  #allocation2 [shape = 'f32[128,128]{1,0:T(8,128)}', space=vmem, size = 0x10000, scoped, tag = 'scratch operand']
  %s0 = inlined_call_operand.hbm [shape: bf16[128,128], index: 0, kind: input, shape index: {}]
  %s1 = inlined_call_operand.hbm [shape: bf16[128,128], index: 1, kind: input, shape index: {}]
  %s2 = inlined_call_operand.hbm [shape: bf16[128,128], index: 2, kind: input, shape index: {}]
  %s3 = inlined_call_operand.vmem [shape: f32[1,128], index: 3, kind: input, shape index: {}]
  %s4 = inlined_call_operand.hbm [shape: bf16[128,128], index: 4, kind: input, shape index: {}]
  %s5 = inlined_call_operand.hbm [shape: bf16[128,128], index: 5, kind: output, shape index: {}]
  %s6 = sld [smem:[#allocation0]]
  $region54: #{tpu_custom_call.1} parent=0
    _
  %s8 = ssub.s32 1, %s6
  %s9 = scalar_select 0, %s8, %s6
  $region1: #{tpu_custom_call.1} parent=0
    #allocation3 [shape = 'u8[32768]{0}', space=vmem, size = 0x8000, scoped, tag = 'input window, operand 0, single buffered']
    #allocation4 [shape = 's32[1]{0}', space=sflag, size = 0x4, scoped, tag = 'scoped memory for tpu_custom_call.1']
    #allocation5 [shape = 's32[1]{0}', space=sflag, size = 0x4, scoped, tag = 'scoped memory for tpu_custom_call.1']
    #allocation6 [shape = 'u8[32768]{0}', space=vmem, size = 0x8000, scoped, tag = 'input window, operand 1, single buffered']
    #allocation7 [shape = 's32[1]{0}', space=sflag, size = 0x4, scoped, tag = 'scoped memory for tpu_custom_call.1']
    #allocation8 [shape = 'u8[32768]{0}', space=vmem, size = 0x8000, scoped, tag = 'input window, operand 2, single buffered']
    #allocation9 [shape = 'u8[32768]{0}', space=vmem, size = 0x8000, scoped, tag = 'input window, operand 4, single buffered']
    #allocation10 [shape = 's32[1]{0}', space=sflag, size = 0x4, scoped, tag = 'scoped memory for tpu_custom_call.1']
    #allocation11 [shape = 'u8[32768]{0}', space=vmem, size = 0x8000, scoped, tag = 'output window, operand 0, single buffered']
    %10 = vsyncpa [#allocation4], 0
    %11 = vsyncpa [#allocation7], 0
    %12 = vsyncpa [#allocation10], 0
    %13 = vsyncpa [#allocation5], 0
    // Predicated region
    $region2: #{tpu_custom_call.1} parent=1 // pred_check
      _
    $region3: #{tpu_custom_call.1} parent=1 // pred_check_branch
      %15 = sbr.rel (0) target = $region5
    $region4: #{tpu_custom_call.1} parent=1 // pred_region
      %s17 = ssub.s32 1024, 1024
      %18 = vsyncadd [#allocation4], %s17
      %s19 = sshll.u32 [#allocation3], 4
      %s20 = int_to_ptr.vmem [resolvable:$true] %s19
      %25 = dma.hbm_to_vmem [thread:$0]  %s0, 1024, %s20, [#allocation4], 64, 64, 4
    $region5: #{tpu_custom_call.1} parent=1 // pred_fallthru
      _
    // Predicated region
    $region6: #{tpu_custom_call.1} parent=1 // pred_check
      _
    $region7: #{tpu_custom_call.1} parent=1 // pred_check_branch
      %27 = sbr.rel (0) target = $region9
    $region8: #{tpu_custom_call.1} parent=1 // pred_region
      %s29 = ssub.s32 1024, 1024
      %30 = vsyncadd [#allocation7], %s29
      %s31 = sshll.u32 [#allocation6], 4
      %s32 = int_to_ptr.vmem [resolvable:$true] %s31
      %37 = dma.hbm_to_vmem [thread:$0]  %s1, 1024, %s32, [#allocation7], 64, 64, 4
    $region9: #{tpu_custom_call.1} parent=1 // pred_fallthru
      _
    // Predicated region
    $region10: #{tpu_custom_call.1} parent=1 // pred_check
      _
    $region11: #{tpu_custom_call.1} parent=1 // pred_check_branch
      %39 = sbr.rel (0) target = $region13
    $region12: #{tpu_custom_call.1} parent=1 // pred_region
      %s41 = ssub.s32 1024, 1024
      %42 = vsyncadd [#allocation7], %s41
      %s43 = sshll.u32 [#allocation8], 4
      %s44 = int_to_ptr.vmem [resolvable:$true] %s43
      %49 = dma.hbm_to_vmem [thread:$0]  %s2, 1024, %s44, [#allocation7], 64, 64, 4
    $region13: #{tpu_custom_call.1} parent=1 // pred_fallthru
      _
    // Predicated region
    $region14: #{tpu_custom_call.1} parent=1 // pred_check
      _
    $region15: #{tpu_custom_call.1} parent=1 // pred_check_branch
      %51 = sbr.rel (0) target = $region17
    $region16: #{tpu_custom_call.1} parent=1 // pred_region
      _
    $region17: #{tpu_custom_call.1} parent=1 // pred_fallthru
      _
    // Predicated region
    $region18: #{tpu_custom_call.1} parent=1 // pred_check
      _
    $region19: #{tpu_custom_call.1} parent=1 // pred_check_branch
      %53 = sbr.rel (0) target = $region21
    $region20: #{tpu_custom_call.1} parent=1 // pred_region
      %s55 = ssub.s32 1024, 1024
      %56 = vsyncadd [#allocation10], %s55
      %s57 = sshll.u32 [#allocation9], 4
      %s58 = int_to_ptr.vmem [resolvable:$true] %s57
      %63 = dma.hbm_to_vmem [thread:$0]  %s4, 1024, %s58, [#allocation10], 64, 64, 4
    $region21: #{tpu_custom_call.1} parent=1 // pred_fallthru
      _
    // Predicated region
    $region22: #{tpu_custom_call.1} parent=1 // pred_check
      _
    $region23: #{tpu_custom_call.1} parent=1 // pred_check_branch
      %65 = sbr.rel (0) target = $region25
    $region24: #{tpu_custom_call.1} parent=1 // pred_region
      %66 = dma.done [#allocation4], 1024
    $region25: #{tpu_custom_call.1} parent=1 // pred_fallthru
      _
    // Predicated region
    $region26: #{tpu_custom_call.1} parent=1 // pred_check
      _
    $region27: #{tpu_custom_call.1} parent=1 // pred_check_branch
      %68 = sbr.rel (0) target = $region29
    $region28: #{tpu_custom_call.1} parent=1 // pred_region
      %69 = dma.done [#allocation7], 1024
    $region29: #{tpu_custom_call.1} parent=1 // pred_fallthru
      _
    // Predicated region
    $region30: #{tpu_custom_call.1} parent=1 // pred_check
      _
    $region31: #{tpu_custom_call.1} parent=1 // pred_check_branch
      %71 = sbr.rel (0) target = $region33
    $region32: #{tpu_custom_call.1} parent=1 // pred_region
      %72 = dma.done [#allocation7], 1024
    $region33: #{tpu_custom_call.1} parent=1 // pred_fallthru
      _
    // Predicated region
    $region34: #{tpu_custom_call.1} parent=1 // pred_check
      _
    $region35: #{tpu_custom_call.1} parent=1 // pred_check_branch
      %74 = sbr.rel (0) target = $region37
    $region36: #{tpu_custom_call.1} parent=1 // pred_region
      %75 = dma.done [#allocation10], 1024
    $region37: #{tpu_custom_call.1} parent=1 // pred_fallthru
      _
    %p77 = scmp.eq.s32.totalorder 0, 0
    // Predicated region
    $region38: #{tpu_custom_call.1} parent=1 // pred_check
      %p78 = pneg %p77
    $region39: #{tpu_custom_call.1} parent=1 // pred_check_branch
      %80 = sbr.rel (%p78) target = $region41
    $region40: #{tpu_custom_call.1} parent=1 // pred_region
      %81 = vst [vmem:[#allocation2] sm:$0xff] 0.0
      %82 = vst [vmem:[#allocation2 + $0x8] sm:$0xff] 0.0
      %83 = vst [vmem:[#allocation2 + $0x10] sm:$0xff] 0.0
      %84 = vst [vmem:[#allocation2 + $0x18] sm:$0xff] 0.0
      %85 = vst [vmem:[#allocation2 + $0x20] sm:$0xff] 0.0
      %86 = vst [vmem:[#allocation2 + $0x28] sm:$0xff] 0.0
      %87 = vst [vmem:[#allocation2 + $0x30] sm:$0xff] 0.0
      %88 = vst [vmem:[#allocation2 + $0x38] sm:$0xff] 0.0
      %89 = vst [vmem:[#allocation2 + $0x40] sm:$0xff] 0.0
      %90 = vst [vmem:[#allocation2 + $0x48] sm:$0xff] 0.0
      %91 = vst [vmem:[#allocation2 + $0x50] sm:$0xff] 0.0
      %92 = vst [vmem:[#allocation2 + $0x58] sm:$0xff] 0.0
      %93 = vst [vmem:[#allocation2 + $0x60] sm:$0xff] 0.0
      %94 = vst [vmem:[#allocation2 + $0x68] sm:$0xff] 0.0
      %95 = vst [vmem:[#allocation2 + $0x70] sm:$0xff] 0.0
      %96 = vst [vmem:[#allocation2 + $0x78] sm:$0xff] 0.0
    $region41: #{tpu_custom_call.1} parent=1 // pred_fallthru
      _
    %s97 = smul.u32 0, 128
    %s98 = sshra.s32 %s97, 3
    %s99 = sand.u32 %s97, 7
    %s100 = smul.addr %s98, 4
    %s101 = scalar_lea.vmem [#allocation6], %s100
    %v102 = vld [vmem:[%s101] sm:$0xf]
    %v103 = vld [vmem:[%s101 + $0x4] sm:$0xf]
    %v104 = vld [vmem:[%s101 + $0x8] sm:$0xf]
    %v105 = vld [vmem:[%s101 + $0xc] sm:$0xf]
    %v106 = vld [vmem:[%s101 + $0x10] sm:$0xf]
    %v107 = vld [vmem:[%s101 + $0x14] sm:$0xf]
    %v108 = vld [vmem:[%s101 + $0x18] sm:$0xf]
    %v109 = vld [vmem:[%s101 + $0x1c] sm:$0xf]
    %v110 = vld [vmem:[%s101 + $0x20] sm:$0xf]
    %v111 = vld [vmem:[%s101 + $0x24] sm:$0xf]
    %v112 = vld [vmem:[%s101 + $0x28] sm:$0xf]
    %v113 = vld [vmem:[%s101 + $0x2c] sm:$0xf]
    %v114 = vld [vmem:[%s101 + $0x30] sm:$0xf]
    %v115 = vld [vmem:[%s101 + $0x34] sm:$0xf]
    %v116 = vld [vmem:[%s101 + $0x38] sm:$0xf]
    %v117 = vld [vmem:[%s101 + $0x3c] sm:$0xf]
    %v118 = vld [vmem:[#allocation2] sm:$0xff]
    %v119 = vld [vmem:[#allocation2 + $0x8] sm:$0xff]
    %v120 = vld [vmem:[#allocation2 + $0x10] sm:$0xff]
    %v121 = vld [vmem:[#allocation2 + $0x18] sm:$0xff]
    %v122 = vld [vmem:[#allocation2 + $0x20] sm:$0xff]
    %v123 = vld [vmem:[#allocation2 + $0x28] sm:$0xff]
    %v124 = vld [vmem:[#allocation2 + $0x30] sm:$0xff]
    %v125 = vld [vmem:[#allocation2 + $0x38] sm:$0xff]
    %v126 = vld [vmem:[#allocation2 + $0x40] sm:$0xff]
    %v127 = vld [vmem:[#allocation2 + $0x48] sm:$0xff]
    %v128 = vld [vmem:[#allocation2 + $0x50] sm:$0xff]
    %v129 = vld [vmem:[#allocation2 + $0x58] sm:$0xff]
    %v130 = vld [vmem:[#allocation2 + $0x60] sm:$0xff]
    %v131 = vld [vmem:[#allocation2 + $0x68] sm:$0xff]
    %v132 = vld [vmem:[#allocation2 + $0x70] sm:$0xff]
    %v133 = vld [vmem:[#allocation2 + $0x78] sm:$0xff]
    %v134 = vld [vmem:[#allocation3] sm:$0xf]
    %v135 = vld [vmem:[#allocation3 + $0x4] sm:$0xf]
    %v136 = vld [vmem:[#allocation3 + $0x8] sm:$0xf]
    %v137 = vld [vmem:[#allocation3 + $0xc] sm:$0xf]
    %v138 = vld [vmem:[#allocation3 + $0x10] sm:$0xf]
    %v139 = vld [vmem:[#allocation3 + $0x14] sm:$0xf]
    %v140 = vld [vmem:[#allocation3 + $0x18] sm:$0xf]
    %v141 = vld [vmem:[#allocation3 + $0x1c] sm:$0xf]
    %v142 = vld [vmem:[#allocation3 + $0x20] sm:$0xf]
    %v143 = vld [vmem:[#allocation3 + $0x24] sm:$0xf]
    %v144 = vld [vmem:[#allocation3 + $0x28] sm:$0xf]
    %v145 = vld [vmem:[#allocation3 + $0x2c] sm:$0xf]
    %v146 = vld [vmem:[#allocation3 + $0x30] sm:$0xf]
    %v147 = vld [vmem:[#allocation3 + $0x34] sm:$0xf]
    %v148 = vld [vmem:[#allocation3 + $0x38] sm:$0xf]
    %v149 = vld [vmem:[#allocation3 + $0x3c] sm:$0xf]
    %v166 = vunpack.c.l.b16 %v134
    %v167 = vunpack.c.l.b16 %v135
    %v168 = vunpack.c.l.b16 %v136
    %v169 = vunpack.c.l.b16 %v137
    %v170 = vunpack.c.l.b16 %v138
    %v171 = vunpack.c.l.b16 %v139
    %v172 = vunpack.c.l.b16 %v140
    %v173 = vunpack.c.l.b16 %v141
    %v174 = vunpack.c.l.b16 %v142
    %v175 = vunpack.c.l.b16 %v143
    %v176 = vunpack.c.l.b16 %v144
    %v177 = vunpack.c.l.b16 %v145
    %v178 = vunpack.c.l.b16 %v146
    %v179 = vunpack.c.l.b16 %v147
    %v180 = vunpack.c.l.b16 %v148
    %v181 = vunpack.c.l.b16 %v149
    %v182 = vpack.c.b16 %v167, %v166
    %v183 = vpack.c.b16 %v169, %v168
    %v184 = vpack.c.b16 %v171, %v170
    %v185 = vpack.c.b16 %v173, %v172
    %v186 = vpack.c.b16 %v175, %v174
    %v187 = vpack.c.b16 %v177, %v176
    %v188 = vpack.c.b16 %v179, %v178
    %v189 = vpack.c.b16 %v181, %v180
    %v214 = vunpack.c.l.b16 %v102
    %v215 = vunpack.c.l.b16 %v103
    %v216 = vunpack.c.l.b16 %v104
    %v217 = vunpack.c.l.b16 %v105
    %v218 = vunpack.c.l.b16 %v106
    %v219 = vunpack.c.l.b16 %v107
    %v220 = vunpack.c.l.b16 %v108
    %v221 = vunpack.c.l.b16 %v109
    %v222 = vunpack.c.l.b16 %v110
    %v223 = vunpack.c.l.b16 %v111
    %v224 = vunpack.c.l.b16 %v112
    %v225 = vunpack.c.l.b16 %v113
    %v226 = vunpack.c.l.b16 %v114
    %v227 = vunpack.c.l.b16 %v115
    %v228 = vunpack.c.l.b16 %v116
    %v229 = vunpack.c.l.b16 %v117
    %v230 = vpack.c.b16 %v215, %v214
    %v231 = vpack.c.b16 %v217, %v216
    %v232 = vpack.c.b16 %v219, %v218
    %v233 = vpack.c.b16 %v221, %v220
    %v234 = vpack.c.b16 %v223, %v222
    %v235 = vpack.c.b16 %v225, %v224
    %v236 = vpack.c.b16 %v227, %v226
    %v237 = vpack.c.b16 %v229, %v228
    %246 = vmatprep.subr.bf16.mxu0 0
    %247 = vmatpush1.bf16.msra.mxu0 %v230
    %248 = vmatprep.subr.bf16.mxu0 0
    %249 = vmatpush1.bf16.msra.mxu0 %v231
    %250 = vmatprep.subr.bf16.mxu0 0
    %251 = vmatpush1.bf16.msra.mxu0 %v232
    %252 = vmatprep.subr.bf16.mxu0 0
    %253 = vmatpush1.bf16.msra.mxu0 %v233
    %254 = vmatprep.subr.bf16.mxu0 0
    %255 = vmatpush1.bf16.msra.mxu0 %v234
    %256 = vmatprep.subr.bf16.mxu0 0
    %257 = vmatpush1.bf16.msra.mxu0 %v235
    %258 = vmatprep.subr.bf16.mxu0 0
    %259 = vmatpush1.bf16.msra.mxu0 %v236
    %260 = vmatprep.subr.bf16.mxu0 0
    %261 = vmatpush1.bf16.msra.mxu0 %v237
    %262 = vmatprep.subr.bf16.mxu0 0
    %263 = vmatpush1.bf16.msra.mxu0 0
    %264 = vmatprep.subr.bf16.mxu0 0
    %265 = vmatpush1.bf16.msra.mxu0 0
    %266 = vmatprep.subr.bf16.mxu0 0
    %267 = vmatpush1.bf16.msra.mxu0 0
    %268 = vmatprep.subr.bf16.mxu0 0
    %269 = vmatpush1.bf16.msra.mxu0 0
    %270 = vmatprep.subr.bf16.mxu0 0
    %271 = vmatpush1.bf16.msra.mxu0 0
    %272 = vmatprep.subr.bf16.mxu0 0
    %273 = vmatpush1.bf16.msra.mxu0 0
    %274 = vmatprep.subr.bf16.mxu0 0
    %275 = vmatpush1.bf16.msra.mxu0 0
    %276 = vmatprep.subr.bf16.mxu0 0
    %277 = vmatpush1.bf16.msra.mxu0 0
    %278 = vmatprep.mubr.bf16.mxu0 0
    %279 = vmatmul.mubr.bf16.gmra.mrb[0].mxu0 %v182
    %v280 = vpop.f32.mrb[0].mxu0
    %v281 = vadd.f32 0.0, %v280
    %v282 = vpop.f32.mrb[0].mxu0
    %v283 = vpop.f32.mrb[0].mxu0
    %v284 = vadd.f32 0.0, %v283
    %v285 = vpop.f32.mrb[0].mxu0
    %286 = vmatprep.mubr.bf16.mxu0 0
    %287 = vmatmul.mubr.bf16.gmra.mrb[0].mxu0 %v183
    %v288 = vpop.f32.mrb[0].mxu0
    %v289 = vadd.f32 0.0, %v288
    %v290 = vpop.f32.mrb[0].mxu0
    %v291 = vpop.f32.mrb[0].mxu0
    %v292 = vadd.f32 0.0, %v291
    %v293 = vpop.f32.mrb[0].mxu0
    %294 = vmatprep.mubr.bf16.mxu0 0
    %295 = vmatmul.mubr.bf16.gmra.mrb[0].mxu0 %v184
    %v296 = vpop.f32.mrb[0].mxu0
    %v297 = vadd.f32 0.0, %v296
    %v298 = vpop.f32.mrb[0].mxu0
    %v299 = vpop.f32.mrb[0].mxu0
    %v300 = vadd.f32 0.0, %v299
    %v301 = vpop.f32.mrb[0].mxu0
    %302 = vmatprep.mubr.bf16.mxu0 0
    %303 = vmatmul.mubr.bf16.gmra.mrb[0].mxu0 %v185
    %v304 = vpop.f32.mrb[0].mxu0
    %v305 = vadd.f32 0.0, %v304
    %v306 = vpop.f32.mrb[0].mxu0
    %v307 = vpop.f32.mrb[0].mxu0
    %v308 = vadd.f32 0.0, %v307
    %v309 = vpop.f32.mrb[0].mxu0
    %310 = vmatprep.mubr.bf16.mxu0 0
    %311 = vmatmul.mubr.bf16.gmra.mrb[0].mxu0 %v186
    %v312 = vpop.f32.mrb[0].mxu0
    %v313 = vadd.f32 0.0, %v312
    %v314 = vpop.f32.mrb[0].mxu0
    %v315 = vpop.f32.mrb[0].mxu0
    %v316 = vadd.f32 0.0, %v315
    %v317 = vpop.f32.mrb[0].mxu0
    %318 = vmatprep.mubr.bf16.mxu0 0
    %319 = vmatmul.mubr.bf16.gmra.mrb[0].mxu0 %v187
    %v320 = vpop.f32.mrb[0].mxu0
    %v321 = vadd.f32 0.0, %v320
    %v322 = vpop.f32.mrb[0].mxu0
    %v323 = vpop.f32.mrb[0].mxu0
    %v324 = vadd.f32 0.0, %v323
    %v325 = vpop.f32.mrb[0].mxu0
    %326 = vmatprep.mubr.bf16.mxu0 0
    %327 = vmatmul.mubr.bf16.gmra.mrb[0].mxu0 %v188
    %v328 = vpop.f32.mrb[0].mxu0
    %v329 = vadd.f32 0.0, %v328
    %v330 = vpop.f32.mrb[0].mxu0
    %v331 = vpop.f32.mrb[0].mxu0
    %v332 = vadd.f32 0.0, %v331
    %v333 = vpop.f32.mrb[0].mxu0
    %334 = vmatprep.mubr.bf16.mxu0 0
    %335 = vmatmul.mubr.bf16.gmra.mrb[0].mxu0 %v189
    %v336 = vpop.f32.mrb[0].mxu0
    %v337 = vadd.f32 0.0, %v336
    %v338 = vpop.f32.mrb[0].mxu0
    %v339 = vpop.f32.mrb[0].mxu0
    %v340 = vadd.f32 0.0, %v339
    %v341 = vpop.f32.mrb[0].mxu0
    %342 = vdwg.mxu0
    %v343 = vadd.f32 %v118, %v281
    %v344 = vadd.f32 %v119, %v284
    %v345 = vadd.f32 %v120, %v289
    %v346 = vadd.f32 %v121, %v292
    %v347 = vadd.f32 %v122, %v297
    %v348 = vadd.f32 %v123, %v300
    %v349 = vadd.f32 %v124, %v305
    %v350 = vadd.f32 %v125, %v308
    %v351 = vadd.f32 %v126, %v313
    %v352 = vadd.f32 %v127, %v316
    %v353 = vadd.f32 %v128, %v321
    %v354 = vadd.f32 %v129, %v324
    %v355 = vadd.f32 %v130, %v329
    %v356 = vadd.f32 %v131, %v332
    %v357 = vadd.f32 %v132, %v337
    %v358 = vadd.f32 %v133, %v340
    %359 = vst [vmem:[#allocation2] sm:$0xff] %v343
    %360 = vst [vmem:[#allocation2 + $0x8] sm:$0xff] %v344
    %361 = vst [vmem:[#allocation2 + $0x10] sm:$0xff] %v345
    %362 = vst [vmem:[#allocation2 + $0x18] sm:$0xff] %v346
    %363 = vst [vmem:[#allocation2 + $0x20] sm:$0xff] %v347
    %364 = vst [vmem:[#allocation2 + $0x28] sm:$0xff] %v348
    %365 = vst [vmem:[#allocation2 + $0x30] sm:$0xff] %v349
    %366 = vst [vmem:[#allocation2 + $0x38] sm:$0xff] %v350
    %367 = vst [vmem:[#allocation2 + $0x40] sm:$0xff] %v351
    %368 = vst [vmem:[#allocation2 + $0x48] sm:$0xff] %v352
    %369 = vst [vmem:[#allocation2 + $0x50] sm:$0xff] %v353
    %370 = vst [vmem:[#allocation2 + $0x58] sm:$0xff] %v354
    %371 = vst [vmem:[#allocation2 + $0x60] sm:$0xff] %v355
    %372 = vst [vmem:[#allocation2 + $0x68] sm:$0xff] %v356
    %373 = vst [vmem:[#allocation2 + $0x70] sm:$0xff] %v357
    %374 = vst [vmem:[#allocation2 + $0x78] sm:$0xff] %v358
    // Predicated region
    $region42: #{tpu_custom_call.1} parent=1 // pred_check
      %p375 = pneg %p77
    $region43: #{tpu_custom_call.1} parent=1 // pred_check_branch
      %377 = sbr.rel (%p375) target = $region45
    $region44: #{tpu_custom_call.1} parent=1 // pred_region
      %v378 = vld [vmem:[#allocation2] sm:$0xff]
      %v379 = vld [vmem:[#allocation2 + $0x8] sm:$0xff]
      %v380 = vld [vmem:[#allocation2 + $0x10] sm:$0xff]
      %v381 = vld [vmem:[#allocation2 + $0x18] sm:$0xff]
      %v382 = vld [vmem:[#allocation2 + $0x20] sm:$0xff]
      %v383 = vld [vmem:[#allocation2 + $0x28] sm:$0xff]
      %v384 = vld [vmem:[#allocation2 + $0x30] sm:$0xff]
      %v385 = vld [vmem:[#allocation2 + $0x38] sm:$0xff]
      %v386 = vld [vmem:[#allocation2 + $0x40] sm:$0xff]
      %v387 = vld [vmem:[#allocation2 + $0x48] sm:$0xff]
      %v388 = vld [vmem:[#allocation2 + $0x50] sm:$0xff]
      %v389 = vld [vmem:[#allocation2 + $0x58] sm:$0xff]
      %v390 = vld [vmem:[#allocation2 + $0x60] sm:$0xff]
      %v391 = vld [vmem:[#allocation2 + $0x68] sm:$0xff]
      %v392 = vld [vmem:[#allocation2 + $0x70] sm:$0xff]
      %v393 = vld [vmem:[#allocation2 + $0x78] sm:$0xff]
      %v394 = vpack.c.bf16 %v379, %v378
      %v395 = vpack.c.bf16 %v381, %v380
      %v396 = vpack.c.bf16 %v383, %v382
      %v397 = vpack.c.bf16 %v385, %v384
      %v398 = vpack.c.bf16 %v387, %v386
      %v399 = vpack.c.bf16 %v389, %v388
      %v400 = vpack.c.bf16 %v391, %v390
      %v401 = vpack.c.bf16 %v393, %v392
      %v402 = vld [vmem:[#allocation8] sm:$0xf]
      %v403 = vld [vmem:[#allocation8 + $0x4] sm:$0xf]
      %v404 = vld [vmem:[#allocation8 + $0x8] sm:$0xf]
      %v405 = vld [vmem:[#allocation8 + $0xc] sm:$0xf]
      %v406 = vld [vmem:[#allocation8 + $0x10] sm:$0xf]
      %v407 = vld [vmem:[#allocation8 + $0x14] sm:$0xf]
      %v408 = vld [vmem:[#allocation8 + $0x18] sm:$0xf]
      %v409 = vld [vmem:[#allocation8 + $0x1c] sm:$0xf]
      %v410 = vld [vmem:[#allocation8 + $0x20] sm:$0xf]
      %v411 = vld [vmem:[#allocation8 + $0x24] sm:$0xf]
      %v412 = vld [vmem:[#allocation8 + $0x28] sm:$0xf]
      %v413 = vld [vmem:[#allocation8 + $0x2c] sm:$0xf]
      %v414 = vld [vmem:[#allocation8 + $0x30] sm:$0xf]
      %v415 = vld [vmem:[#allocation8 + $0x34] sm:$0xf]
      %v416 = vld [vmem:[#allocation8 + $0x38] sm:$0xf]
      %v417 = vld [vmem:[#allocation8 + $0x3c] sm:$0xf]
      %v418 = vld [vmem:[%s3] sm:$0x1]
      %v420 = vlaneseq
      %v421 = vshrl.u32 %v420, 7
      %v422 = vsub.s32 0, %v421
      %v423 = vrot.slane %v418, %v422
      %v441 = vunpack.c.l.b16 %v402
      %v442 = vunpack.c.l.b16 %v403
      %v443 = vunpack.c.l.b16 %v404
      %v444 = vunpack.c.l.b16 %v405
      %v445 = vunpack.c.l.b16 %v406
      %v446 = vunpack.c.l.b16 %v407
      %v447 = vunpack.c.l.b16 %v408
      %v448 = vunpack.c.l.b16 %v409
      %v449 = vunpack.c.l.b16 %v410
      %v450 = vunpack.c.l.b16 %v411
      %v451 = vunpack.c.l.b16 %v412
      %v452 = vunpack.c.l.b16 %v413
      %v453 = vunpack.c.l.b16 %v414
      %v454 = vunpack.c.l.b16 %v415
      %v455 = vunpack.c.l.b16 %v416
      %v456 = vunpack.c.l.b16 %v417
      %v457 = vpack.c.b16 %v442, %v441
      %v458 = vpack.c.b16 %v444, %v443
      %v459 = vpack.c.b16 %v446, %v445
      %v460 = vpack.c.b16 %v448, %v447
      %v461 = vpack.c.b16 %v450, %v449
      %v462 = vpack.c.b16 %v452, %v451
      %v463 = vpack.c.b16 %v454, %v453
      %v464 = vpack.c.b16 %v456, %v455
      %473 = vmatprep.subr.bf16.mxu0 0
      %474 = vmatpush1.bf16.msra.mxu0 %v457
      %475 = vmatprep.subr.bf16.mxu0 0
      %476 = vmatpush1.bf16.msra.mxu0 %v458
      %477 = vmatprep.subr.bf16.mxu0 0
      %478 = vmatpush1.bf16.msra.mxu0 %v459
      %479 = vmatprep.subr.bf16.mxu0 0
      %480 = vmatpush1.bf16.msra.mxu0 %v460
      %481 = vmatprep.subr.bf16.mxu0 0
      %482 = vmatpush1.bf16.msra.mxu0 %v461
      %483 = vmatprep.subr.bf16.mxu0 0
      %484 = vmatpush1.bf16.msra.mxu0 %v462
      %485 = vmatprep.subr.bf16.mxu0 0
      %486 = vmatpush1.bf16.msra.mxu0 %v463
      %487 = vmatprep.subr.bf16.mxu0 0
      %488 = vmatpush1.bf16.msra.mxu0 %v464
      %489 = vmatprep.subr.bf16.mxu0 0
      %490 = vmatpush1.bf16.msra.mxu0 0
      %491 = vmatprep.subr.bf16.mxu0 0
      %492 = vmatpush1.bf16.msra.mxu0 0
      %493 = vmatprep.subr.bf16.mxu0 0
      %494 = vmatpush1.bf16.msra.mxu0 0
      %495 = vmatprep.subr.bf16.mxu0 0
      %496 = vmatpush1.bf16.msra.mxu0 0
      %497 = vmatprep.subr.bf16.mxu0 0
      %498 = vmatpush1.bf16.msra.mxu0 0
      %499 = vmatprep.subr.bf16.mxu0 0
      %500 = vmatpush1.bf16.msra.mxu0 0
      %501 = vmatprep.subr.bf16.mxu0 0
      %502 = vmatpush1.bf16.msra.mxu0 0
      %503 = vmatprep.subr.bf16.mxu0 0
      %504 = vmatpush1.bf16.msra.mxu0 0
      %505 = vmatprep.mubr.bf16.mxu0 0
      %506 = vmatmul.mubr.bf16.gmra.mrb[0].mxu0 %v394
      %v507 = vpop.f32.mrb[0].mxu0
      %v508 = vadd.f32 %v423, %v507
      %v509 = vpop.f32.mrb[0].mxu0
      %v510 = vpop.f32.mrb[0].mxu0
      %v511 = vadd.f32 %v423, %v510
      %v512 = vpop.f32.mrb[0].mxu0
      %513 = vmatprep.mubr.bf16.mxu0 0
      %514 = vmatmul.mubr.bf16.gmra.mrb[0].mxu0 %v395
      %v515 = vpop.f32.mrb[0].mxu0
      %v516 = vadd.f32 %v423, %v515
      %v517 = vpop.f32.mrb[0].mxu0
      %v518 = vpop.f32.mrb[0].mxu0
      %v519 = vadd.f32 %v423, %v518
      %v520 = vpop.f32.mrb[0].mxu0
      %521 = vmatprep.mubr.bf16.mxu0 0
      %522 = vmatmul.mubr.bf16.gmra.mrb[0].mxu0 %v396
      %v523 = vpop.f32.mrb[0].mxu0
      %v524 = vadd.f32 %v423, %v523
      %v525 = vpop.f32.mrb[0].mxu0
      %v526 = vpop.f32.mrb[0].mxu0
      %v527 = vadd.f32 %v423, %v526
      %v528 = vpop.f32.mrb[0].mxu0
      %529 = vmatprep.mubr.bf16.mxu0 0
      %530 = vmatmul.mubr.bf16.gmra.mrb[0].mxu0 %v397
      %v531 = vpop.f32.mrb[0].mxu0
      %v532 = vadd.f32 %v423, %v531
      %v533 = vpop.f32.mrb[0].mxu0
      %v534 = vpop.f32.mrb[0].mxu0
      %v535 = vadd.f32 %v423, %v534
      %v536 = vpop.f32.mrb[0].mxu0
      %537 = vmatprep.mubr.bf16.mxu0 0
      %538 = vmatmul.mubr.bf16.gmra.mrb[0].mxu0 %v398
      %v539 = vpop.f32.mrb[0].mxu0
      %v540 = vadd.f32 %v423, %v539
      %v541 = vpop.f32.mrb[0].mxu0
      %v542 = vpop.f32.mrb[0].mxu0
      %v543 = vadd.f32 %v423, %v542
      %v544 = vpop.f32.mrb[0].mxu0
      %545 = vmatprep.mubr.bf16.mxu0 0
      %546 = vmatmul.mubr.bf16.gmra.mrb[0].mxu0 %v399
      %v547 = vpop.f32.mrb[0].mxu0
      %v548 = vadd.f32 %v423, %v547
      %v549 = vpop.f32.mrb[0].mxu0
      %v550 = vpop.f32.mrb[0].mxu0
      %v551 = vadd.f32 %v423, %v550
      %v552 = vpop.f32.mrb[0].mxu0
      %553 = vmatprep.mubr.bf16.mxu0 0
      %554 = vmatmul.mubr.bf16.gmra.mrb[0].mxu0 %v400
      %v555 = vpop.f32.mrb[0].mxu0
      %v556 = vadd.f32 %v423, %v555
      %v557 = vpop.f32.mrb[0].mxu0
      %v558 = vpop.f32.mrb[0].mxu0
      %v559 = vadd.f32 %v423, %v558
      %v560 = vpop.f32.mrb[0].mxu0
      %561 = vmatprep.mubr.bf16.mxu0 0
      %562 = vmatmul.mubr.bf16.gmra.mrb[0].mxu0 %v401
      %v563 = vpop.f32.mrb[0].mxu0
      %v564 = vadd.f32 %v423, %v563
      %v565 = vpop.f32.mrb[0].mxu0
      %v566 = vpop.f32.mrb[0].mxu0
      %v567 = vadd.f32 %v423, %v566
      %v568 = vpop.f32.mrb[0].mxu0
      %569 = vdwg.mxu0
      %v570 = vmax.f32 %v508, 0.0
      %v571 = vmax.f32 %v511, 0.0
      %v572 = vmax.f32 %v516, 0.0
      %v573 = vmax.f32 %v519, 0.0
      %v574 = vmax.f32 %v524, 0.0
      %v575 = vmax.f32 %v527, 0.0
      %v576 = vmax.f32 %v532, 0.0
      %v577 = vmax.f32 %v535, 0.0
      %v578 = vmax.f32 %v540, 0.0
      %v579 = vmax.f32 %v543, 0.0
      %v580 = vmax.f32 %v548, 0.0
      %v581 = vmax.f32 %v551, 0.0
      %v582 = vmax.f32 %v556, 0.0
      %v583 = vmax.f32 %v559, 0.0
      %v584 = vmax.f32 %v564, 0.0
      %v585 = vmax.f32 %v567, 0.0
      %v586 = vpack.c.bf16 %v571, %v570
      %v587 = vpack.c.bf16 %v573, %v572
      %v588 = vpack.c.bf16 %v575, %v574
      %v589 = vpack.c.bf16 %v577, %v576
      %v590 = vpack.c.bf16 %v579, %v578
      %v591 = vpack.c.bf16 %v581, %v580
      %v592 = vpack.c.bf16 %v583, %v582
      %v593 = vpack.c.bf16 %v585, %v584
      %v594 = vld [vmem:[#allocation9] sm:$0xf]
      %v595 = vld [vmem:[#allocation9 + $0x4] sm:$0xf]
      %v596 = vld [vmem:[#allocation9 + $0x8] sm:$0xf]
      %v597 = vld [vmem:[#allocation9 + $0xc] sm:$0xf]
      %v598 = vld [vmem:[#allocation9 + $0x10] sm:$0xf]
      %v599 = vld [vmem:[#allocation9 + $0x14] sm:$0xf]
      %v600 = vld [vmem:[#allocation9 + $0x18] sm:$0xf]
      %v601 = vld [vmem:[#allocation9 + $0x1c] sm:$0xf]
      %v602 = vld [vmem:[#allocation9 + $0x20] sm:$0xf]
      %v603 = vld [vmem:[#allocation9 + $0x24] sm:$0xf]
      %v604 = vld [vmem:[#allocation9 + $0x28] sm:$0xf]
      %v605 = vld [vmem:[#allocation9 + $0x2c] sm:$0xf]
      %v606 = vld [vmem:[#allocation9 + $0x30] sm:$0xf]
      %v607 = vld [vmem:[#allocation9 + $0x34] sm:$0xf]
      %v608 = vld [vmem:[#allocation9 + $0x38] sm:$0xf]
      %v609 = vld [vmem:[#allocation9 + $0x3c] sm:$0xf]
      %v626 = vunpack.c.l.b16 %v594
      %v627 = vunpack.c.l.b16 %v595
      %v628 = vunpack.c.l.b16 %v596
      %v629 = vunpack.c.l.b16 %v597
      %v630 = vunpack.c.l.b16 %v598
      %v631 = vunpack.c.l.b16 %v599
      %v632 = vunpack.c.l.b16 %v600
      %v633 = vunpack.c.l.b16 %v601
      %v634 = vunpack.c.l.b16 %v602
      %v635 = vunpack.c.l.b16 %v603
      %v636 = vunpack.c.l.b16 %v604
      %v637 = vunpack.c.l.b16 %v605
      %v638 = vunpack.c.l.b16 %v606
      %v639 = vunpack.c.l.b16 %v607
      %v640 = vunpack.c.l.b16 %v608
      %v641 = vunpack.c.l.b16 %v609
      %v642 = vpack.c.b16 %v627, %v626
      %v643 = vpack.c.b16 %v629, %v628
      %v644 = vpack.c.b16 %v631, %v630
      %v645 = vpack.c.b16 %v633, %v632
      %v646 = vpack.c.b16 %v635, %v634
      %v647 = vpack.c.b16 %v637, %v636
      %v648 = vpack.c.b16 %v639, %v638
      %v649 = vpack.c.b16 %v641, %v640
      %658 = vmatprep.subr.bf16.mxu0 0
      %659 = vmatpush1.bf16.msra.mxu0 %v642
      %660 = vmatprep.subr.bf16.mxu0 0
      %661 = vmatpush1.bf16.msra.mxu0 %v643
      %662 = vmatprep.subr.bf16.mxu0 0
      %663 = vmatpush1.bf16.msra.mxu0 %v644
      %664 = vmatprep.subr.bf16.mxu0 0
      %665 = vmatpush1.bf16.msra.mxu0 %v645
      %666 = vmatprep.subr.bf16.mxu0 0
      %667 = vmatpush1.bf16.msra.mxu0 %v646
      %668 = vmatprep.subr.bf16.mxu0 0
      %669 = vmatpush1.bf16.msra.mxu0 %v647
      %670 = vmatprep.subr.bf16.mxu0 0
      %671 = vmatpush1.bf16.msra.mxu0 %v648
      %672 = vmatprep.subr.bf16.mxu0 0
      %673 = vmatpush1.bf16.msra.mxu0 %v649
      %674 = vmatprep.subr.bf16.mxu0 0
      %675 = vmatpush1.bf16.msra.mxu0 0
      %676 = vmatprep.subr.bf16.mxu0 0
      %677 = vmatpush1.bf16.msra.mxu0 0
      %678 = vmatprep.subr.bf16.mxu0 0
      %679 = vmatpush1.bf16.msra.mxu0 0
      %680 = vmatprep.subr.bf16.mxu0 0
      %681 = vmatpush1.bf16.msra.mxu0 0
      %682 = vmatprep.subr.bf16.mxu0 0
      %683 = vmatpush1.bf16.msra.mxu0 0
      %684 = vmatprep.subr.bf16.mxu0 0
      %685 = vmatpush1.bf16.msra.mxu0 0
      %686 = vmatprep.subr.bf16.mxu0 0
      %687 = vmatpush1.bf16.msra.mxu0 0
      %688 = vmatprep.subr.bf16.mxu0 0
      %689 = vmatpush1.bf16.msra.mxu0 0
      %690 = vmatprep.mubr.bf16.mxu0 0
      %691 = vmatmul.mubr.bf16.gmra.mrb[0].mxu0 %v586
      %v692 = vpop.f32.mrb[0].mxu0
      %v693 = vadd.f32 0.0, %v692
      %v694 = vpop.f32.mrb[0].mxu0
      %v695 = vpop.f32.mrb[0].mxu0
      %v696 = vadd.f32 0.0, %v695
      %v697 = vpop.f32.mrb[0].mxu0
      %698 = vmatprep.mubr.bf16.mxu0 0
      %699 = vmatmul.mubr.bf16.gmra.mrb[0].mxu0 %v587
      %v700 = vpop.f32.mrb[0].mxu0
      %v701 = vadd.f32 0.0, %v700
      %v702 = vpop.f32.mrb[0].mxu0
      %v703 = vpop.f32.mrb[0].mxu0
      %v704 = vadd.f32 0.0, %v703
      %v705 = vpop.f32.mrb[0].mxu0
      %706 = vmatprep.mubr.bf16.mxu0 0
      %707 = vmatmul.mubr.bf16.gmra.mrb[0].mxu0 %v588
      %v708 = vpop.f32.mrb[0].mxu0
      %v709 = vadd.f32 0.0, %v708
      %v710 = vpop.f32.mrb[0].mxu0
      %v711 = vpop.f32.mrb[0].mxu0
      %v712 = vadd.f32 0.0, %v711
      %v713 = vpop.f32.mrb[0].mxu0
      %714 = vmatprep.mubr.bf16.mxu0 0
      %715 = vmatmul.mubr.bf16.gmra.mrb[0].mxu0 %v589
      %v716 = vpop.f32.mrb[0].mxu0
      %v717 = vadd.f32 0.0, %v716
      %v718 = vpop.f32.mrb[0].mxu0
      %v719 = vpop.f32.mrb[0].mxu0
      %v720 = vadd.f32 0.0, %v719
      %v721 = vpop.f32.mrb[0].mxu0
      %722 = vmatprep.mubr.bf16.mxu0 0
      %723 = vmatmul.mubr.bf16.gmra.mrb[0].mxu0 %v590
      %v724 = vpop.f32.mrb[0].mxu0
      %v725 = vadd.f32 0.0, %v724
      %v726 = vpop.f32.mrb[0].mxu0
      %v727 = vpop.f32.mrb[0].mxu0
      %v728 = vadd.f32 0.0, %v727
      %v729 = vpop.f32.mrb[0].mxu0
      %730 = vmatprep.mubr.bf16.mxu0 0
      %731 = vmatmul.mubr.bf16.gmra.mrb[0].mxu0 %v591
      %v732 = vpop.f32.mrb[0].mxu0
      %v733 = vadd.f32 0.0, %v732
      %v734 = vpop.f32.mrb[0].mxu0
      %v735 = vpop.f32.mrb[0].mxu0
      %v736 = vadd.f32 0.0, %v735
      %v737 = vpop.f32.mrb[0].mxu0
      %738 = vmatprep.mubr.bf16.mxu0 0
      %739 = vmatmul.mubr.bf16.gmra.mrb[0].mxu0 %v592
      %v740 = vpop.f32.mrb[0].mxu0
      %v741 = vadd.f32 0.0, %v740
      %v742 = vpop.f32.mrb[0].mxu0
      %v743 = vpop.f32.mrb[0].mxu0
      %v744 = vadd.f32 0.0, %v743
      %v745 = vpop.f32.mrb[0].mxu0
      %746 = vmatprep.mubr.bf16.mxu0 0
      %747 = vmatmul.mubr.bf16.gmra.mrb[0].mxu0 %v593
      %v748 = vpop.f32.mrb[0].mxu0
      %v749 = vadd.f32 0.0, %v748
      %v750 = vpop.f32.mrb[0].mxu0
      %v751 = vpop.f32.mrb[0].mxu0
      %v752 = vadd.f32 0.0, %v751
      %v753 = vpop.f32.mrb[0].mxu0
      %754 = vdwg.mxu0
      %v755 = vpack.c.bf16 %v696, %v693
      %v756 = vpack.c.bf16 %v704, %v701
      %v757 = vpack.c.bf16 %v712, %v709
      %v758 = vpack.c.bf16 %v720, %v717
      %v759 = vpack.c.bf16 %v728, %v725
      %v760 = vpack.c.bf16 %v736, %v733
      %v761 = vpack.c.bf16 %v744, %v741
      %v762 = vpack.c.bf16 %v752, %v749
      %v771 = vunpack.c.l.b16 %v755
      %v772 = vunpack.c.h.b16 %v755
      %v773 = vunpack.c.l.b16 %v756
      %v774 = vunpack.c.h.b16 %v756
      %v775 = vunpack.c.l.b16 %v757
      %v776 = vunpack.c.h.b16 %v757
      %v777 = vunpack.c.l.b16 %v758
      %v778 = vunpack.c.h.b16 %v758
      %v779 = vunpack.c.l.b16 %v759
      %v780 = vunpack.c.h.b16 %v759
      %v781 = vunpack.c.l.b16 %v760
      %v782 = vunpack.c.h.b16 %v760
      %v783 = vunpack.c.l.b16 %v761
      %v784 = vunpack.c.h.b16 %v761
      %v785 = vunpack.c.l.b16 %v762
      %v786 = vunpack.c.h.b16 %v762
      %v787 = vpack.c.b16 %v771, %v771
      %v788 = vpack.c.b16 %v772, %v772
      %v789 = vpack.c.b16 %v773, %v773
      %v790 = vpack.c.b16 %v774, %v774
      %v791 = vpack.c.b16 %v775, %v775
      %v792 = vpack.c.b16 %v776, %v776
      %v793 = vpack.c.b16 %v777, %v777
      %v794 = vpack.c.b16 %v778, %v778
      %v795 = vpack.c.b16 %v779, %v779
      %v796 = vpack.c.b16 %v780, %v780
      %v797 = vpack.c.b16 %v781, %v781
      %v798 = vpack.c.b16 %v782, %v782
      %v799 = vpack.c.b16 %v783, %v783
      %v800 = vpack.c.b16 %v784, %v784
      %v801 = vpack.c.b16 %v785, %v785
      %v802 = vpack.c.b16 %v786, %v786
      %819 = vst [vmem:[#allocation11] sm:$0xf] %v787
      %820 = vst [vmem:[#allocation11 + $0x4] sm:$0xf] %v788
      %821 = vst [vmem:[#allocation11 + $0x8] sm:$0xf] %v789
      %822 = vst [vmem:[#allocation11 + $0xc] sm:$0xf] %v790
      %823 = vst [vmem:[#allocation11 + $0x10] sm:$0xf] %v791
      %824 = vst [vmem:[#allocation11 + $0x14] sm:$0xf] %v792
      %825 = vst [vmem:[#allocation11 + $0x18] sm:$0xf] %v793
      %826 = vst [vmem:[#allocation11 + $0x1c] sm:$0xf] %v794
      %827 = vst [vmem:[#allocation11 + $0x20] sm:$0xf] %v795
      %828 = vst [vmem:[#allocation11 + $0x24] sm:$0xf] %v796
      %829 = vst [vmem:[#allocation11 + $0x28] sm:$0xf] %v797
      %830 = vst [vmem:[#allocation11 + $0x2c] sm:$0xf] %v798
      %831 = vst [vmem:[#allocation11 + $0x30] sm:$0xf] %v799
      %832 = vst [vmem:[#allocation11 + $0x34] sm:$0xf] %v800
      %833 = vst [vmem:[#allocation11 + $0x38] sm:$0xf] %v801
      %834 = vst [vmem:[#allocation11 + $0x3c] sm:$0xf] %v802
    $region45: #{tpu_custom_call.1} parent=1 // pred_fallthru
      _
    // Predicated region
    $region46: #{tpu_custom_call.1} parent=1 // pred_check
      _
    $region47: #{tpu_custom_call.1} parent=1 // pred_check_branch
      %836 = sbr.rel (0) target = $region49
    $region48: #{tpu_custom_call.1} parent=1 // pred_region
      %s838 = ssub.s32 1024, 1024
      %839 = vsyncadd [#allocation5], %s838
      %s840 = sshll.u32 [#allocation11], 4
      %s841 = int_to_ptr.vmem [resolvable:$true] %s840
      %846 = dma.vmem_to_hbm [thread:$0]  %s841, 1024, %s5, [#allocation5], 64, 64, 4
    $region49: #{tpu_custom_call.1} parent=1 // pred_fallthru
      _
    // Predicated region
    $region50: #{tpu_custom_call.1} parent=1 // pred_check
      _
    $region51: #{tpu_custom_call.1} parent=1 // pred_check_branch
      %848 = sbr.rel (0) target = $region53
    $region52: #{tpu_custom_call.1} parent=1 // pred_region
      %849 = dma.done [#allocation5], 1024
    $region53: #{tpu_custom_call.1} parent=1 // pred_fallthru
      _
    %850 = vsyncpa [#allocation4], 1
    %851 = vsyncpa [#allocation7], 1
    %852 = vsyncpa [#allocation10], 1
    %853 = vsyncpa [#allocation5], 1

</llo_original>
